<compile_context>
chip_gen: v5e
topology: v5e:2x2
jax: 0.10.0
libtpu: 0.0.40
codegen_flags: <defaults>
</compile_context>

<pallas_src>
import jax
import jax.numpy as jnp
from jax.experimental import pallas as pl
from jax.experimental.pallas import tpu as pltpu


def decoder_kernel(lat_ref, qc_ref, w1_ref, b1_ref, w2a_ref, w2b_ref, b2_ref,
                   out_ref):
    """One row tile.  Shapes (F = fold, T = packed-row tile):
         lat_ref  (T, 32F)   streamed activations (producer dtype)
         qc_ref   (T, 64F)   streamed activations (producer dtype)
         w1_ref   (32F, 32F) block-diag fold of linear1 weight (activation dtype)
         b1_ref   (1, 32F)   f32
         w2a_ref  (32F, F)   block-diag fold of linear2 weight[:32]  (f32)
         w2b_ref  (64F, F)   block-diag fold of linear2 weight[32:]  (activation dtype)
         b2_ref   (1,)       f32 scalar in SMEM
         out_ref  (T, F)     f32 scores
    """
    lat = lat_ref[...]
    qc = qc_ref[...]

    # linear1 + tanh : MXU dot with f32 accumulation, f32 elementwise.
    y = jnp.tanh(
        jnp.dot(lat, w1_ref[...], preferred_element_type=jnp.float32)
        + b1_ref[...])

    # linear2 over the *virtual* concat [y, qc].  The block-diagonal fold keeps the
    # F packed rows independent, so this is exactly cat @ W2 per original row.
    s = (jnp.dot(y, w2a_ref[...], preferred_element_type=jnp.float32)
         + jnp.dot(qc, w2b_ref[...], preferred_element_type=jnp.float32)
         + b2_ref[0])

    out_ref[...] = jax.nn.sigmoid(s).astype(out_ref.dtype)


def _pick_fold(n_rows, requested):
    """Largest fold <= requested that divides n_rows.

    Guarantees we never have to pad the activations (a pad would re-write both
    tensors in HBM — a whole extra pass on a memory-bound kernel)."""
    for f in (8, 4, 2, 1):
        if f <= requested and n_rows % f == 0:
            return f
    return 1


def _fold_params(params, dl, fold, lat_dtype, qc_dtype):
    """Build the block-diagonal ("lane-folded") weights.  Tiny arrays; done once."""
    eye = jnp.eye(fold, dtype=jnp.float32)
    w1 = params["w1"].astype(jnp.float32)            # (dl, dl)
    w2 = params["w2"].astype(jnp.float32)            # (dl + dqc, 1)
    w1f = jnp.kron(eye, w1).astype(lat_dtype)        # (dl*F, dl*F)
    b1f = jnp.tile(params["b1"].astype(jnp.float32), (1, fold))   # (1, dl*F)
    w2af = jnp.kron(eye, w2[:dl])                    # (dl*F, F)  f32: multiplies tanh out
    w2bf = jnp.kron(eye, w2[dl:]).astype(qc_dtype)   # (dqc*F, F)
    b2 = params["b2"].reshape(-1)[:1].astype(jnp.float32)         # (1,) scalar -> SMEM
    return w1f, b1f, w2af, w2bf, b2


def decoder_forward(latent, qc_emb, params, *, tile_rows=16384, fold=8):
    """latent: [B, S, D_latent], qc_emb: [B, S, D_q + D_c]  ->  scores [B, S].

    tile_rows: original rows per grid step (8K-16K keeps each step's DMA well above
               the fixed per-step overhead).
    fold:      rows packed into the lane axis (8 for v6e/v7x, 4 for v5e).
    Activations are streamed in whatever dtype the caller provides (no extra cast
    pass); all accumulation / elementwise math is f32.
    """
    B, S, Dl = latent.shape
    Dqc = qc_emb.shape[-1]
    N = B * S

    f = _pick_fold(N, fold)
    P = N // f
    # Free, contiguous (bitcast) reshapes: rows fold into the lane axis.
    latp = latent.reshape(P, Dl * f)
    qcp = qc_emb.reshape(P, Dqc * f)

    w1f, b1f, w2af, w2bf, b2 = _fold_params(params, Dl, f, latent.dtype, qc_emb.dtype)

    # Row tile in packed rows.  The ragged last block (P % tile_p != 0) is handled by
    # Pallas masking — the padded rows' garbage never crosses rows and their stores
    # are dropped — so no activation padding is ever needed.
    tile_p = min(max(1, tile_rows // f), P)
    if tile_p < P:
        tile_p = max(8, (tile_p // 8) * 8)           # sublane-aligned
        tile_p = min(tile_p, P)

    grid = (pl.cdiv(P, tile_p),)

    out = pl.pallas_call(
        decoder_kernel,
        out_shape=jax.ShapeDtypeStruct((P, f), jnp.float32),
        grid_spec=pltpu.PrefetchScalarGridSpec(
            num_scalar_prefetch=0,
            grid=grid,
            in_specs=[
                # streamed, row-tiled, lane-dense activations
                pl.BlockSpec((tile_p, Dl * f), lambda i: (i, 0)),
                pl.BlockSpec((tile_p, Dqc * f), lambda i: (i, 0)),
                # folded weights / biases: constant index_map -> resident in VMEM
                pl.BlockSpec((Dl * f, Dl * f), lambda i: (0, 0)),
                pl.BlockSpec((1, Dl * f), lambda i: (0, 0)),
                pl.BlockSpec((Dl * f, f), lambda i: (0, 0)),
                pl.BlockSpec((Dqc * f, f), lambda i: (0, 0)),
                # scalar bias of linear2 -> SMEM
                pl.BlockSpec(memory_space=pltpu.MemorySpace.SMEM),
            ],
            out_specs=pl.BlockSpec((tile_p, f), lambda i: (i, 0)),
        ),
        compiler_params=pltpu.CompilerParams(
            # HBM-bound kernel; v7x's two TensorCores share HBM, so plain "parallel"
            # suffices.  Switch to pltpu.CORE_PARALLEL only if profiling shows the
            # kernel is not bandwidth-bound on v7x.
            dimension_semantics=("parallel",),
            vmem_limit_bytes=48 * 1024 * 1024),
    )(latp, qcp, w1f, b1f, w2af, w2bf, b2)

    return out.reshape(-1)[:N].reshape(B, S)


def decoder_reference(latent, qc_emb, params):
    """Pure-JAX f32 reference (mirrors the PyTorch forward exactly)."""
    y = jnp.tanh(latent @ params["w1"] + params["b1"][0])
    cat = jnp.concatenate([y, qc_emb], axis=-1)
    s = cat @ params["w2"] + params["b2"][0]
    return jax.nn.sigmoid(s)[..., 0]


def init_params(key, dim_latent, dim_qc):
    """Matches the module's init: xavier_normal_ weights, default Linear biases.
    Weights stored as [in, out] so kernels compute x @ W + b."""
    k1, k2, k3, k4 = jax.random.split(key, 4)
    d_in2 = dim_latent + dim_qc
    std1 = (2.0 / (dim_latent + dim_latent)) ** 0.5
    std2 = (2.0 / (d_in2 + 1)) ** 0.5
    b1_bound = 1.0 / (dim_latent ** 0.5)
    b2_bound = 1.0 / (d_in2 ** 0.5)
    return {
        "w1": std1 * jax.random.normal(k1, (dim_latent, dim_latent), jnp.float32),
        "b1": jax.random.uniform(k2, (1, dim_latent), jnp.float32, -b1_bound, b1_bound),
        "w2": std2 * jax.random.normal(k3, (d_in2, 1), jnp.float32),
        "b2": jax.random.uniform(k4, (1, 1), jnp.float32, -b2_bound, b2_bound),
    }


if __name__ == "__main__":
    # Dims per the module config: dim_latent=32, dim_question=32, dim_concept=32.
    dim_latent, dim_question, dim_concept = 32, 32, 32
    dim_qc = dim_question + dim_concept

    key = jax.random.PRNGKey(0)
    k_lat, k_qc, k_p = jax.random.split(key, 3)
    params = init_params(k_p, dim_latent, dim_qc)

    # --- Test 1: f32, x8 lane fold, small tile so the grid has 4 steps ----------
    B, S = 4, 64                                             # N = 256 rows
    latent = jax.random.normal(k_lat, (B, S, dim_latent), dtype=jnp.float32)
    qc_emb = jax.random.normal(k_qc, (B, S, dim_qc), dtype=jnp.float32)
    ref = decoder_reference(latent, qc_emb, params)

    out = decoder_forward(latent, qc_emb, params, tile_rows=64, fold=8)
    out = jax.block_until_ready(out)
    assert out.shape == (B, S)
    assert jnp.allclose(out, ref, atol=1e-5, rtol=1e-5), "f32 fold=8 mismatch"

    # --- Test 2: ragged last row block (P % tile_p != 0), masked by Pallas ------
    B2, S2 = 5, 56                                           # N = 280, P = 35, tile_p = 16
    lat2 = jax.random.normal(jax.random.PRNGKey(1), (B2, S2, dim_latent), jnp.float32)
    qc2 = jax.random.normal(jax.random.PRNGKey(2), (B2, S2, dim_qc), jnp.float32)
    ref2 = decoder_reference(lat2, qc2, params)
    out2 = jax.block_until_ready(
        decoder_forward(lat2, qc2, params, tile_rows=128, fold=8))
    assert jnp.allclose(out2, ref2, atol=1e-5, rtol=1e-5), "ragged-block mismatch"

    # --- Test 3: N not divisible by 8 -> fold auto-downgrades (no padding copy) -
    B3, S3 = 3, 50                                           # N = 150 -> fold = 2
    lat3 = jax.random.normal(jax.random.PRNGKey(3), (B3, S3, dim_latent), jnp.float32)
    qc3 = jax.random.normal(jax.random.PRNGKey(4), (B3, S3, dim_qc), jnp.float32)
    ref3 = decoder_reference(lat3, qc3, params)
    out3 = jax.block_until_ready(decoder_forward(lat3, qc3, params))
    assert jnp.allclose(out3, ref3, atol=1e-5, rtol=1e-5), "auto-fold mismatch"

    # --- Test 4: defaults (large tile -> single block) with bf16 activations as
    #             emitted by an upstream producer; f32 math inside the kernel -----
    out_bf = jax.block_until_ready(
        decoder_forward(latent.astype(jnp.bfloat16), qc_emb.astype(jnp.bfloat16), params))
    assert jnp.allclose(out_bf, ref, atol=3e-2, rtol=3e-2), "bf16 mismatch"

    print("KERNEL_OK")
</pallas_src>

<mosaic_0001>
module attributes {stable_mosaic.version = 11 : i64} {
  func.func @decoder_kernel(%arg0: i32, %arg1: memref<8x256xf32, #tpu.memory_space<vmem>>, %arg2: memref<8x512xf32, #tpu.memory_space<vmem>>, %arg3: memref<256x256xf32, #tpu.memory_space<vmem>>, %arg4: memref<1x256xf32, #tpu.memory_space<vmem>>, %arg5: memref<256x8xf32, #tpu.memory_space<vmem>>, %arg6: memref<512x8xf32, #tpu.memory_space<vmem>>, %arg7: memref<1xf32, #tpu.memory_space<smem>>, %arg8: memref<8x8xf32, #tpu.memory_space<vmem>>) attributes {dimension_semantics = [#tpu.dimension_semantics<parallel>], iteration_bounds = array<i64: 4>, scalar_prefetch = 0 : i64, scratch_operands = 0 : i64, tpu.core_type = #tpu.core_type<tc>, window_params = [{transform_indices = @transform_0, window_bounds = array<i64: 8, 256>}, {transform_indices = @transform_1, window_bounds = array<i64: 8, 512>}, {pipeline_mode = #tpu.pipeline_mode<synchronous>, transform_indices = @transform_2, window_bounds = array<i64: 256, 256>}, {pipeline_mode = #tpu.pipeline_mode<synchronous>, transform_indices = @transform_3, window_bounds = array<i64: 1, 256>}, {pipeline_mode = #tpu.pipeline_mode<synchronous>, transform_indices = @transform_4, window_bounds = array<i64: 256, 8>}, {pipeline_mode = #tpu.pipeline_mode<synchronous>, transform_indices = @transform_5, window_bounds = array<i64: 512, 8>}, {transform_indices = @transform_6, window_bounds = array<i64: 1>}, {transform_indices = @transform_7, window_bounds = array<i64: 8, 8>}]} {
    %c0 = arith.constant 0 : index
    %c0_0 = arith.constant 0 : index
    %0 = vector.load %arg1[%c0, %c0_0] : memref<8x256xf32, #tpu.memory_space<vmem>>, vector<8x256xf32>
    %c0_1 = arith.constant 0 : index
    %c0_2 = arith.constant 0 : index
    %1 = vector.load %arg2[%c0_1, %c0_2] : memref<8x512xf32, #tpu.memory_space<vmem>>, vector<8x512xf32>
    %c0_3 = arith.constant 0 : index
    %c0_4 = arith.constant 0 : index
    %2 = vector.load %arg3[%c0_3, %c0_4] : memref<256x256xf32, #tpu.memory_space<vmem>>, vector<256x256xf32>
    %cst = arith.constant dense<0.000000e+00> : vector<8x256xf32>
    %3 = tpu.matmul %0, %2, %cst {dimension_numbers = #tpu.dot_dimension_numbers<[1], [0], [0], [1], [0, 0, 1, 1], [], []>} : vector<8x256xf32>, vector<256x256xf32>, vector<8x256xf32> -> vector<8x256xf32>
    %c0_5 = arith.constant 0 : index
    %c0_6 = arith.constant 0 : index
    %4 = vector.load %arg4[%c0_5, %c0_6] : memref<1x256xf32, #tpu.memory_space<vmem>>, vector<1x256xf32>
    %5 = vector.broadcast %4 : vector<1x256xf32> to vector<8x256xf32>
    %6 = arith.addf %3, %5 : vector<8x256xf32>
    %7 = math.tanh %6 : vector<8x256xf32>
    %c0_7 = arith.constant 0 : index
    %c0_8 = arith.constant 0 : index
    %8 = vector.load %arg5[%c0_7, %c0_8] : memref<256x8xf32, #tpu.memory_space<vmem>>, vector<256x8xf32>
    %cst_9 = arith.constant dense<0.000000e+00> : vector<8x8xf32>
    %9 = tpu.matmul %7, %8, %cst_9 {dimension_numbers = #tpu.dot_dimension_numbers<[1], [0], [0], [1], [0, 0, 1, 1], [], []>} : vector<8x256xf32>, vector<256x8xf32>, vector<8x8xf32> -> vector<8x8xf32>
    %c0_10 = arith.constant 0 : index
    %c0_11 = arith.constant 0 : index
    %10 = vector.load %arg6[%c0_10, %c0_11] : memref<512x8xf32, #tpu.memory_space<vmem>>, vector<512x8xf32>
    %cst_12 = arith.constant dense<0.000000e+00> : vector<8x8xf32>
    %11 = tpu.matmul %1, %10, %cst_12 {dimension_numbers = #tpu.dot_dimension_numbers<[1], [0], [0], [1], [0, 0, 1, 1], [], []>} : vector<8x512xf32>, vector<512x8xf32>, vector<8x8xf32> -> vector<8x8xf32>
    %12 = arith.addf %9, %11 : vector<8x8xf32>
    %c0_13 = arith.constant 0 : index
    %13 = memref.load %arg7[%c0_13] : memref<1xf32, #tpu.memory_space<smem>>
    %14 = vector.broadcast %13 : f32 to vector<8x8xf32>
    %15 = arith.addf %12, %14 : vector<8x8xf32>
    %16 = arith.negf %15 : vector<8x8xf32>
    %17 = math.exp %16 : vector<8x8xf32>
    %cst_14 = arith.constant 1.000000e+00 : f32
    %18 = vector.broadcast %cst_14 : f32 to vector<8x8xf32>
    %19 = arith.addf %18, %17 : vector<8x8xf32>
    %20 = arith.divf %18, %19 : vector<8x8xf32>
    %c0_15 = arith.constant 0 : index
    %c0_16 = arith.constant 0 : index
    %21 = vector.load %arg8[%c0_15, %c0_16] : memref<8x8xf32, #tpu.memory_space<vmem>>, vector<8x8xf32>
    tpu.vector_store %arg8[%c0_15, %c0_16], %20 {strides = array<i32>} : memref<8x8xf32, #tpu.memory_space<vmem>>, vector<8x8xf32>,
    return
  }
  func.func @transform_0(%arg0: i32) -> (i32, i32) {
    %c0_i32 = arith.constant 0 : i32
    %c0_i32_0 = arith.constant 0 : i32
    return %arg0, %c0_i32 : i32, i32
  }
  func.func @transform_1(%arg0: i32) -> (i32, i32) {
    %c0_i32 = arith.constant 0 : i32
    %c0_i32_0 = arith.constant 0 : i32
    return %arg0, %c0_i32 : i32, i32
  }
  func.func @transform_2(%arg0: i32) -> (i32, i32) {
    %c0_i32 = arith.constant 0 : i32
    %c0_i32_0 = arith.constant 0 : i32
    %c0_i32_1 = arith.constant 0 : i32
    return %c0_i32, %c0_i32_0 : i32, i32
  }
  func.func @transform_3(%arg0: i32) -> (i32, i32) {
    %c0_i32 = arith.constant 0 : i32
    %c0_i32_0 = arith.constant 0 : i32
    %c0_i32_1 = arith.constant 0 : i32
    return %c0_i32, %c0_i32_0 : i32, i32
  }
  func.func @transform_4(%arg0: i32) -> (i32, i32) {
    %c0_i32 = arith.constant 0 : i32
    %c0_i32_0 = arith.constant 0 : i32
    %c0_i32_1 = arith.constant 0 : i32
    return %c0_i32, %c0_i32_0 : i32, i32
  }
  func.func @transform_5(%arg0: i32) -> (i32, i32) {
    %c0_i32 = arith.constant 0 : i32
    %c0_i32_0 = arith.constant 0 : i32
    %c0_i32_1 = arith.constant 0 : i32
    return %c0_i32, %c0_i32_0 : i32, i32
  }
  func.func @transform_6(%arg0: i32) -> i32 {
    %c0_i32 = arith.constant 0 : i32
    %c0_i32_0 = arith.constant 0 : i32
    return %c0_i32 : i32
  }
  func.func @transform_7(%arg0: i32) -> (i32, i32) {
    %c0_i32 = arith.constant 0 : i32
    %c0_i32_0 = arith.constant 0 : i32
    return %arg0, %c0_i32 : i32, i32
  }
}

</mosaic_0001>

<llo_original>
// kernel: tpu_custom_call.1
$region0: #{tpu_custom_call.1}
  #allocation0 [shape = 'u32[]', space=smem, size = 0x4, offset = 0x4, fixed_abs, tag = 'smem constant byte address 0x4 - core index']
  #allocation1 [shape = 'u32[72,128]{1,0:T(1,128)}', space=vmem, size = 0x9000, scoped, tag = 'internal scratch']
  #allocation2 [shape = 'f32[1]{0:T(128)S(6)}', space=smem, size = 0x200, scoped, tag = 'scoped memory for tpu_custom_call.1']
  %s0 = inlined_call_operand.vmem [shape: f32[32,256], index: 0, kind: input, shape index: {}]
  %s1 = inlined_call_operand.vmem [shape: f32[32,512], index: 1, kind: input, shape index: {}]
  %s2 = inlined_call_operand.vmem [shape: f32[256,256], index: 2, kind: input, shape index: {}]
  %s3 = inlined_call_operand.vmem [shape: f32[1,256], index: 3, kind: input, shape index: {}]
  %s4 = inlined_call_operand.vmem [shape: f32[256,8], index: 4, kind: input, shape index: {}]
  %s5 = inlined_call_operand.vmem [shape: f32[512,8], index: 5, kind: input, shape index: {}]
  %s6 = inlined_call_operand.<no memory space> [shape: f32[1], index: 6, kind: input, shape index: {}]
  %s7 = inlined_call_operand.vmem [shape: f32[32,8], index: 7, kind: output, shape index: {}]
  %s8 = sld [smem:[#allocation0]]
  $region61: #{tpu_custom_call.1} parent=0
    _
  %s10 = ssub.s32 1, %s8
  %s11 = scalar_select 0, %s10, %s8
  %12 = sst [smem:[#allocation2]] %s6
  loop: start=0, step=1, limit=6
  $region2: #{tpu_custom_call.1} parent=0 // loop_pre_header
    _
  $region3: #{tpu_custom_call.1} parent=0 // loop_header
    %s14 = sphi 0, %s18
    %p15 = scmp.ge.s32.totalorder %s14, 6
    %s24 = sphi 0, %s26
    %s27 = sphi 0, %s24
    %s28 = sphi 0, %s27
    %s44 = sphi 0, %s28
    %s50 = sphi 0, %s52
    %s53 = sphi 0, %s50
    %s54 = sphi 0, %s53
    %s70 = sphi 0, %s54
    %s74 = sphi 0, %s74
    %s76 = sphi 0, %s74
    %s77 = sphi 0, %s76
    %s91 = sphi 0, %s77
    %s95 = sphi 0, %s95
    %s97 = sphi 0, %s95
    %s98 = sphi 0, %s97
    %s112 = sphi 0, %s98
    %s116 = sphi 0, %s116
    %s118 = sphi 0, %s116
    %s119 = sphi 0, %s118
    %s133 = sphi 0, %s119
    %s137 = sphi 0, %s137
    %s139 = sphi 0, %s137
    %s140 = sphi 0, %s139
    %s154 = sphi 0, %s140
    %s158 = sphi 0, %s158
    %s160 = sphi 0, %s158
    %s161 = sphi 0, %s160
    %s175 = sphi 0, %s161
    %s181 = sphi 0, %s183
    %s184 = sphi 0, %s181
    %s185 = sphi 0, %s184
    %s201 = sphi 0, %s185
  $region4: #{tpu_custom_call.1} parent=0 // loop_header_branch
    %17 = sbr.rel (%p15) target = $region8
  $region5: #{tpu_custom_call.1} parent=0 // loop_body
    %s19 = ssub.s32 %s14, 1
    %s20 = ssub.s32 %s14, 2
    %s21 = sadd.s32 %s14, 1
    %s22 = ssub.s32 %s14, %s21
    %p23 = scmp.eq.s32.totalorder %s22, 0
    %s25 = sadd.s32 %s24, 1
    %s26 = scalar_select %p23, %s24, %s25
    %p29 = pneg %p23
    %p30 = scmp.eq.s32.totalorder %s14, 3
    %p31 = por %p29, %p30
    %p32 = scmp.ne.s32.totalorder %s24, %s27
    %p33 = scmp.eq.s32.totalorder %s14, 0
    %p34 = por %p32, %p33
    %p35 = scmp.ne.s32.totalorder %s24, %s27
    %p36 = scmp.eq.s32.totalorder %s19, 3
    %p37 = por %p35, %p36
    %p38 = scmp.ne.s32.totalorder %s27, %s28
    %p39 = scmp.eq.s32.totalorder %s19, 0
    %p40 = por %p38, %p39
    %p41 = scmp.ne.s32.totalorder %s27, %s28
    %p42 = scmp.eq.s32.totalorder %s20, 3
    %p43 = por %p41, %p42
    %p45 = scmp.ne.s32.totalorder %s28, %s44
    %p46 = scmp.eq.s32.totalorder %s20, 0
    %p47 = por %p45, %p46
    %s48 = ssub.s32 %s14, %s21
    %p49 = scmp.eq.s32.totalorder %s48, 0
    %s51 = sadd.s32 %s50, 1
    %s52 = scalar_select %p49, %s50, %s51
    %p55 = pneg %p49
    %p56 = scmp.eq.s32.totalorder %s14, 3
    %p57 = por %p55, %p56
    %p58 = scmp.ne.s32.totalorder %s50, %s53
    %p59 = scmp.eq.s32.totalorder %s14, 0
    %p60 = por %p58, %p59
    %p61 = scmp.ne.s32.totalorder %s50, %s53
    %p62 = scmp.eq.s32.totalorder %s19, 3
    %p63 = por %p61, %p62
    %p64 = scmp.ne.s32.totalorder %s53, %s54
    %p65 = scmp.eq.s32.totalorder %s19, 0
    %p66 = por %p64, %p65
    %p67 = scmp.ne.s32.totalorder %s53, %s54
    %p68 = scmp.eq.s32.totalorder %s20, 3
    %p69 = por %p67, %p68
    %p71 = scmp.ne.s32.totalorder %s54, %s70
    %p72 = scmp.eq.s32.totalorder %s20, 0
    %p73 = por %p71, %p72
    %s75 = sadd.s32 %s74, 1
    %p78 = scmp.eq.s32.totalorder %s14, 3
    %p79 = scmp.ne.s32.totalorder %s74, %s76
    %p80 = scmp.eq.s32.totalorder %s14, 0
    %p81 = por %p79, %p80
    %p82 = scmp.ne.s32.totalorder %s74, %s76
    %p83 = scmp.eq.s32.totalorder %s19, 3
    %p84 = por %p82, %p83
    %p85 = scmp.ne.s32.totalorder %s76, %s77
    %p86 = scmp.eq.s32.totalorder %s19, 0
    %p87 = por %p85, %p86
    %p88 = scmp.ne.s32.totalorder %s76, %s77
    %p89 = scmp.eq.s32.totalorder %s20, 3
    %p90 = por %p88, %p89
    %p92 = scmp.ne.s32.totalorder %s77, %s91
    %p93 = scmp.eq.s32.totalorder %s20, 0
    %p94 = por %p92, %p93
    %s96 = sadd.s32 %s95, 1
    %p99 = scmp.eq.s32.totalorder %s14, 3
    %p100 = scmp.ne.s32.totalorder %s95, %s97
    %p101 = scmp.eq.s32.totalorder %s14, 0
    %p102 = por %p100, %p101
    %p103 = scmp.ne.s32.totalorder %s95, %s97
    %p104 = scmp.eq.s32.totalorder %s19, 3
    %p105 = por %p103, %p104
    %p106 = scmp.ne.s32.totalorder %s97, %s98
    %p107 = scmp.eq.s32.totalorder %s19, 0
    %p108 = por %p106, %p107
    %p109 = scmp.ne.s32.totalorder %s97, %s98
    %p110 = scmp.eq.s32.totalorder %s20, 3
    %p111 = por %p109, %p110
    %p113 = scmp.ne.s32.totalorder %s98, %s112
    %p114 = scmp.eq.s32.totalorder %s20, 0
    %p115 = por %p113, %p114
    %s117 = sadd.s32 %s116, 1
    %p120 = scmp.eq.s32.totalorder %s14, 3
    %p121 = scmp.ne.s32.totalorder %s116, %s118
    %p122 = scmp.eq.s32.totalorder %s14, 0
    %p123 = por %p121, %p122
    %p124 = scmp.ne.s32.totalorder %s116, %s118
    %p125 = scmp.eq.s32.totalorder %s19, 3
    %p126 = por %p124, %p125
    %p127 = scmp.ne.s32.totalorder %s118, %s119
    %p128 = scmp.eq.s32.totalorder %s19, 0
    %p129 = por %p127, %p128
    %p130 = scmp.ne.s32.totalorder %s118, %s119
    %p131 = scmp.eq.s32.totalorder %s20, 3
    %p132 = por %p130, %p131
    %p134 = scmp.ne.s32.totalorder %s119, %s133
    %p135 = scmp.eq.s32.totalorder %s20, 0
    %p136 = por %p134, %p135
    %s138 = sadd.s32 %s137, 1
    %p141 = scmp.eq.s32.totalorder %s14, 3
    %p142 = scmp.ne.s32.totalorder %s137, %s139
    %p143 = scmp.eq.s32.totalorder %s14, 0
    %p144 = por %p142, %p143
    %p145 = scmp.ne.s32.totalorder %s137, %s139
    %p146 = scmp.eq.s32.totalorder %s19, 3
    %p147 = por %p145, %p146
    %p148 = scmp.ne.s32.totalorder %s139, %s140
    %p149 = scmp.eq.s32.totalorder %s19, 0
    %p150 = por %p148, %p149
    %p151 = scmp.ne.s32.totalorder %s139, %s140
    %p152 = scmp.eq.s32.totalorder %s20, 3
    %p153 = por %p151, %p152
    %p155 = scmp.ne.s32.totalorder %s140, %s154
    %p156 = scmp.eq.s32.totalorder %s20, 0
    %p157 = por %p155, %p156
    %s159 = sadd.s32 %s158, 1
    %p162 = scmp.eq.s32.totalorder %s14, 3
    %p163 = scmp.ne.s32.totalorder %s158, %s160
    %p164 = scmp.eq.s32.totalorder %s14, 0
    %p165 = por %p163, %p164
    %p166 = scmp.ne.s32.totalorder %s158, %s160
    %p167 = scmp.eq.s32.totalorder %s19, 3
    %p168 = por %p166, %p167
    %p169 = scmp.ne.s32.totalorder %s160, %s161
    %p170 = scmp.eq.s32.totalorder %s19, 0
    %p171 = por %p169, %p170
    %p172 = scmp.ne.s32.totalorder %s160, %s161
    %p173 = scmp.eq.s32.totalorder %s20, 3
    %p174 = por %p172, %p173
    %p176 = scmp.ne.s32.totalorder %s161, %s175
    %p177 = scmp.eq.s32.totalorder %s20, 0
    %p178 = por %p176, %p177
    %s179 = ssub.s32 %s14, %s21
    %p180 = scmp.eq.s32.totalorder %s179, 0
    %s182 = sadd.s32 %s181, 1
    %s183 = scalar_select %p180, %s181, %s182
    %p186 = pneg %p180
    %p187 = scmp.eq.s32.totalorder %s14, 3
    %p188 = por %p186, %p187
    %p189 = scmp.ne.s32.totalorder %s181, %s184
    %p190 = scmp.eq.s32.totalorder %s14, 0
    %p191 = por %p189, %p190
    %p192 = scmp.ne.s32.totalorder %s181, %s184
    %p193 = scmp.eq.s32.totalorder %s19, 3
    %p194 = por %p192, %p193
    %p195 = scmp.ne.s32.totalorder %s184, %s185
    %p196 = scmp.eq.s32.totalorder %s19, 0
    %p197 = por %p195, %p196
    %p198 = scmp.ne.s32.totalorder %s184, %s185
    %p199 = scmp.eq.s32.totalorder %s20, 3
    %p200 = por %p198, %p199
    %p202 = scmp.ne.s32.totalorder %s185, %s201
    %p203 = scmp.eq.s32.totalorder %s20, 0
    %p204 = por %p202, %p203
    %p205 = scmp.le.s32.totalorder 1, %s14
    %p206 = scmp.lt.s32.totalorder %s14, 5
    %p207 = pnand %p205, %p206
    %p208 = pneg %p207
    // Predicated region
    $region9: #{tpu_custom_call.1} parent=5 // pred_check
      _
    $region10: #{tpu_custom_call.1} parent=5 // pred_check_branch
      %210 = sbr.rel (%p207) target = $region12
    $region11: #{tpu_custom_call.1} parent=5 // pred_region
      %s211 = ssub.s32 %s14, 1
      // Predicated region
      $region13: #{tpu_custom_call.1} parent=11 // pred_check
        %p212 = pneg %p87
      $region14: #{tpu_custom_call.1} parent=11 // pred_check_branch
        %214 = sbr.rel (%p212) target = $region16
      $region15: #{tpu_custom_call.1} parent=11 // pred_region
        _
      $region16: #{tpu_custom_call.1} parent=11 // pred_fallthru
        _
      // Predicated region
      $region17: #{tpu_custom_call.1} parent=11 // pred_check
        %p215 = pneg %p108
      $region18: #{tpu_custom_call.1} parent=11 // pred_check_branch
        %217 = sbr.rel (%p215) target = $region20
      $region19: #{tpu_custom_call.1} parent=11 // pred_region
        _
      $region20: #{tpu_custom_call.1} parent=11 // pred_fallthru
        _
      // Predicated region
      $region21: #{tpu_custom_call.1} parent=11 // pred_check
        %p218 = pneg %p129
      $region22: #{tpu_custom_call.1} parent=11 // pred_check_branch
        %220 = sbr.rel (%p218) target = $region24
      $region23: #{tpu_custom_call.1} parent=11 // pred_region
        _
      $region24: #{tpu_custom_call.1} parent=11 // pred_fallthru
        _
      // Predicated region
      $region25: #{tpu_custom_call.1} parent=11 // pred_check
        %p221 = pneg %p150
      $region26: #{tpu_custom_call.1} parent=11 // pred_check_branch
        %223 = sbr.rel (%p221) target = $region28
      $region27: #{tpu_custom_call.1} parent=11 // pred_region
        _
      $region28: #{tpu_custom_call.1} parent=11 // pred_fallthru
        _
      // Predicated region
      $region29: #{tpu_custom_call.1} parent=11 // pred_check
        %p224 = pneg %p171
      $region30: #{tpu_custom_call.1} parent=11 // pred_check_branch
        %226 = sbr.rel (%p224) target = $region32
      $region31: #{tpu_custom_call.1} parent=11 // pred_region
        _
      $region32: #{tpu_custom_call.1} parent=11 // pred_fallthru
        _
    $region12: #{tpu_custom_call.1} parent=5 // pred_fallthru
      _
    %p227 = scmp.lt.s32.totalorder %s14, 4
    // Predicated region
    $region33: #{tpu_custom_call.1} parent=5 // pred_check
      %p228 = pneg %p227
    $region34: #{tpu_custom_call.1} parent=5 // pred_check_branch
      %230 = sbr.rel (%p228) target = $region36
    $region35: #{tpu_custom_call.1} parent=5 // pred_region
      // Predicated region
      $region37: #{tpu_custom_call.1} parent=35 // pred_check
        %p231 = pneg %p34
      $region38: #{tpu_custom_call.1} parent=35 // pred_check_branch
        %233 = sbr.rel (%p231) target = $region40
      $region39: #{tpu_custom_call.1} parent=35 // pred_region
        %p234 = scmp.lt.s32.totalorder %s14, 3
        %s235 = scalar_select %p234, %s14, 3
        %s236 = smul.addr %s235, 2
        %s237 = smul.addr %s236, 8
        %s238 = scalar_lea.vmem %s0, %s237
      $region40: #{tpu_custom_call.1} parent=35 // pred_fallthru
        _
      // Predicated region
      $region41: #{tpu_custom_call.1} parent=35 // pred_check
        %p239 = pneg %p60
      $region42: #{tpu_custom_call.1} parent=35 // pred_check_branch
        %241 = sbr.rel (%p239) target = $region44
      $region43: #{tpu_custom_call.1} parent=35 // pred_region
        %p242 = scmp.lt.s32.totalorder %s14, 3
        %s243 = scalar_select %p242, %s14, 3
        %s244 = smul.addr %s243, 4
        %s245 = smul.addr %s244, 8
        %s246 = scalar_lea.vmem %s1, %s245
      $region44: #{tpu_custom_call.1} parent=35 // pred_fallthru
        _
    $region36: #{tpu_custom_call.1} parent=5 // pred_fallthru
      _
    %p247 = scmp.le.s32.totalorder 1, %s14
    %p248 = scmp.lt.s32.totalorder %s14, 5
    %p249 = pnand %p247, %p248
    %p250 = pneg %p249
    // Predicated region
    $region45: #{tpu_custom_call.1} parent=5 // pred_check
      _
    $region46: #{tpu_custom_call.1} parent=5 // pred_check_branch
      %252 = sbr.rel (%p249) target = $region48
    $region47: #{tpu_custom_call.1} parent=5 // pred_region
      %s253 = ssub.s32 %s14, 1
      %p254 = scmp.lt.s32.totalorder %s19, 3
      %s255 = scalar_select %p254, %s19, 3
      %s256 = smul.addr %s255, 2
      %s257 = smul.addr %s256, 8
      %s258 = scalar_lea.vmem %s0, %s257
      %p259 = pneg %p40
      %p260 = pneg %p37
      %p261 = scmp.lt.s32.totalorder %s19, 3
      %s262 = scalar_select %p261, %s19, 3
      %s263 = smul.addr %s262, 4
      %s264 = smul.addr %s263, 8
      %s265 = scalar_lea.vmem %s1, %s264
      %p266 = pneg %p66
      %p267 = pneg %p63
      %p268 = pneg %p87
      %p269 = pneg %p84
      %p270 = pneg %p108
      %p271 = pneg %p105
      %p272 = pneg %p129
      %p273 = pneg %p126
      %p274 = pneg %p150
      %p275 = pneg %p147
      %p276 = pneg %p171
      %p277 = pneg %p168
      %p278 = pneg %p197
      %p279 = pneg %p194
      %p280 = scmp.lt.s32.totalorder %s19, 3
      %s281 = scalar_select %p280, %s19, 3
      %s282 = smul.addr %s281, 8
      %s283 = scalar_lea.vmem %s7, %s282
      %p284 = scmp.lt.s32.totalorder %s19, 3
      %s285 = scalar_select %p284, %s19, 3
      %s286 = smul.addr %s285, 2
      %s287 = smul.addr %s286, 8
      %s288 = scalar_lea.vmem %s0, %s287
      %p289 = scmp.lt.s32.totalorder %s19, 3
      %s290 = scalar_select %p289, %s19, 3
      %s291 = smul.addr %s290, 4
      %s292 = smul.addr %s291, 8
      %s293 = scalar_lea.vmem %s1, %s292
      %p294 = scmp.lt.s32.totalorder %s19, 3
      %s295 = scalar_select %p294, %s19, 3
      %s296 = smul.addr %s295, 8
      %s297 = scalar_lea.vmem %s7, %s296
      %v298 = vld [vmem:[%s288] sm:$0xff]
      %v299 = vld [vmem:[%s288 + $0x8] sm:$0xff]
      %v300 = vld [vmem:[%s293] sm:$0xff]
      %v301 = vld [vmem:[%s293 + $0x8] sm:$0xff]
      %v302 = vld [vmem:[%s293 + $0x10] sm:$0xff]
      %v303 = vld [vmem:[%s293 + $0x18] sm:$0xff]
      %v304 = vld [vmem:[%s2] sm:$0xff]
      %v305 = vld [vmem:[%s2 + $0x8] sm:$0xff]
      %v306 = vld [vmem:[%s2 + $0x10] sm:$0xff]
      %v307 = vld [vmem:[%s2 + $0x18] sm:$0xff]
      %v308 = vld [vmem:[%s2 + $0x20] sm:$0xff]
      %v309 = vld [vmem:[%s2 + $0x28] sm:$0xff]
      %v310 = vld [vmem:[%s2 + $0x30] sm:$0xff]
      %v311 = vld [vmem:[%s2 + $0x38] sm:$0xff]
      %v312 = vld [vmem:[%s2 + $0x40] sm:$0xff]
      %v313 = vld [vmem:[%s2 + $0x48] sm:$0xff]
      %v314 = vld [vmem:[%s2 + $0x50] sm:$0xff]
      %v315 = vld [vmem:[%s2 + $0x58] sm:$0xff]
      %v316 = vld [vmem:[%s2 + $0x60] sm:$0xff]
      %v317 = vld [vmem:[%s2 + $0x68] sm:$0xff]
      %v318 = vld [vmem:[%s2 + $0x70] sm:$0xff]
      %v319 = vld [vmem:[%s2 + $0x78] sm:$0xff]
      %v320 = vld [vmem:[%s2 + $0x80] sm:$0xff]
      %v321 = vld [vmem:[%s2 + $0x88] sm:$0xff]
      %v322 = vld [vmem:[%s2 + $0x90] sm:$0xff]
      %v323 = vld [vmem:[%s2 + $0x98] sm:$0xff]
      %v324 = vld [vmem:[%s2 + $0xa0] sm:$0xff]
      %v325 = vld [vmem:[%s2 + $0xa8] sm:$0xff]
      %v326 = vld [vmem:[%s2 + $0xb0] sm:$0xff]
      %v327 = vld [vmem:[%s2 + $0xb8] sm:$0xff]
      %v328 = vld [vmem:[%s2 + $0xc0] sm:$0xff]
      %v329 = vld [vmem:[%s2 + $0xc8] sm:$0xff]
      %v330 = vld [vmem:[%s2 + $0xd0] sm:$0xff]
      %v331 = vld [vmem:[%s2 + $0xd8] sm:$0xff]
      %v332 = vld [vmem:[%s2 + $0xe0] sm:$0xff]
      %v333 = vld [vmem:[%s2 + $0xe8] sm:$0xff]
      %v334 = vld [vmem:[%s2 + $0xf0] sm:$0xff]
      %v335 = vld [vmem:[%s2 + $0xf8] sm:$0xff]
      %v336 = vld [vmem:[%s2 + $0x100] sm:$0xff]
      %v337 = vld [vmem:[%s2 + $0x108] sm:$0xff]
      %v338 = vld [vmem:[%s2 + $0x110] sm:$0xff]
      %v339 = vld [vmem:[%s2 + $0x118] sm:$0xff]
      %v340 = vld [vmem:[%s2 + $0x120] sm:$0xff]
      %v341 = vld [vmem:[%s2 + $0x128] sm:$0xff]
      %v342 = vld [vmem:[%s2 + $0x130] sm:$0xff]
      %v343 = vld [vmem:[%s2 + $0x138] sm:$0xff]
      %v344 = vld [vmem:[%s2 + $0x140] sm:$0xff]
      %v345 = vld [vmem:[%s2 + $0x148] sm:$0xff]
      %v346 = vld [vmem:[%s2 + $0x150] sm:$0xff]
      %v347 = vld [vmem:[%s2 + $0x158] sm:$0xff]
      %v348 = vld [vmem:[%s2 + $0x160] sm:$0xff]
      %v349 = vld [vmem:[%s2 + $0x168] sm:$0xff]
      %v350 = vld [vmem:[%s2 + $0x170] sm:$0xff]
      %v351 = vld [vmem:[%s2 + $0x178] sm:$0xff]
      %v352 = vld [vmem:[%s2 + $0x180] sm:$0xff]
      %v353 = vld [vmem:[%s2 + $0x188] sm:$0xff]
      %v354 = vld [vmem:[%s2 + $0x190] sm:$0xff]
      %v355 = vld [vmem:[%s2 + $0x198] sm:$0xff]
      %v356 = vld [vmem:[%s2 + $0x1a0] sm:$0xff]
      %v357 = vld [vmem:[%s2 + $0x1a8] sm:$0xff]
      %v358 = vld [vmem:[%s2 + $0x1b0] sm:$0xff]
      %v359 = vld [vmem:[%s2 + $0x1b8] sm:$0xff]
      %v360 = vld [vmem:[%s2 + $0x1c0] sm:$0xff]
      %v361 = vld [vmem:[%s2 + $0x1c8] sm:$0xff]
      %v362 = vld [vmem:[%s2 + $0x1d0] sm:$0xff]
      %v363 = vld [vmem:[%s2 + $0x1d8] sm:$0xff]
      %v364 = vld [vmem:[%s2 + $0x1e0] sm:$0xff]
      %v365 = vld [vmem:[%s2 + $0x1e8] sm:$0xff]
      %v366 = vld [vmem:[%s2 + $0x1f0] sm:$0xff]
      %v367 = vld [vmem:[%s2 + $0x1f8] sm:$0xff]
      %v368 = vld [vmem:[%s3] sm:$0x3]
      %v370 = vperm.slane %v368, 0
      %v371 = vperm.slane %v368, 1
      %374 = vmatpush.msra.mxu0 %v334
      %375 = vmatpush.msra.mxu0 %v332
      %376 = vmatpush.msra.mxu0 %v330
      %377 = vmatpush.msra.mxu0 %v328
      %378 = vmatpush.msra.mxu0 %v326
      %379 = vmatpush.msra.mxu0 %v324
      %380 = vmatpush.msra.mxu0 %v322
      %381 = vmatpush.msra.mxu0 %v320
      %382 = vmatpush.msra.mxu0 %v318
      %383 = vmatpush.msra.mxu0 %v316
      %384 = vmatpush.msra.mxu0 %v314
      %385 = vmatpush.msra.mxu0 %v312
      %386 = vmatpush.msra.mxu0 %v310
      %387 = vmatpush.msra.mxu0 %v308
      %388 = vmatpush.msra.mxu0 %v306
      %389 = vmatpush.msra.mxu0 %v304
      %390 = vmatmul.f32.gmra.mxu0 %v298
      %v391 = vpop.f32.mrf.mxu0
      %v392 = vadd.f32 %v370, %v391
      %393 = vdwg.mxu0
      %394 = vmatpush.msra.mxu0 %v366
      %395 = vmatpush.msra.mxu0 %v364
      %396 = vmatpush.msra.mxu0 %v362
      %397 = vmatpush.msra.mxu0 %v360
      %398 = vmatpush.msra.mxu0 %v358
      %399 = vmatpush.msra.mxu0 %v356
      %400 = vmatpush.msra.mxu0 %v354
      %401 = vmatpush.msra.mxu0 %v352
      %402 = vmatpush.msra.mxu0 %v350
      %403 = vmatpush.msra.mxu0 %v348
      %404 = vmatpush.msra.mxu0 %v346
      %405 = vmatpush.msra.mxu0 %v344
      %406 = vmatpush.msra.mxu0 %v342
      %407 = vmatpush.msra.mxu0 %v340
      %408 = vmatpush.msra.mxu0 %v338
      %409 = vmatpush.msra.mxu0 %v336
      %410 = vmatmul.f32.gmra.mxu0 %v299
      %v411 = vpop.f32.mrf.mxu0
      %v412 = vadd.f32 %v392, %v411
      %413 = vdwg.mxu0
      %414 = vmatpush.msra.mxu0 %v335
      %415 = vmatpush.msra.mxu0 %v333
      %416 = vmatpush.msra.mxu0 %v331
      %417 = vmatpush.msra.mxu0 %v329
      %418 = vmatpush.msra.mxu0 %v327
      %419 = vmatpush.msra.mxu0 %v325
      %420 = vmatpush.msra.mxu0 %v323
      %421 = vmatpush.msra.mxu0 %v321
      %422 = vmatpush.msra.mxu0 %v319
      %423 = vmatpush.msra.mxu0 %v317
      %424 = vmatpush.msra.mxu0 %v315
      %425 = vmatpush.msra.mxu0 %v313
      %426 = vmatpush.msra.mxu0 %v311
      %427 = vmatpush.msra.mxu0 %v309
      %428 = vmatpush.msra.mxu0 %v307
      %429 = vmatpush.msra.mxu0 %v305
      %430 = vmatmul.f32.gmra.mxu0 %v298
      %v431 = vpop.f32.mrf.mxu0
      %v432 = vadd.f32 %v371, %v431
      %433 = vdwg.mxu0
      %434 = vmatpush.msra.mxu0 %v367
      %435 = vmatpush.msra.mxu0 %v365
      %436 = vmatpush.msra.mxu0 %v363
      %437 = vmatpush.msra.mxu0 %v361
      %438 = vmatpush.msra.mxu0 %v359
      %439 = vmatpush.msra.mxu0 %v357
      %440 = vmatpush.msra.mxu0 %v355
      %441 = vmatpush.msra.mxu0 %v353
      %442 = vmatpush.msra.mxu0 %v351
      %443 = vmatpush.msra.mxu0 %v349
      %444 = vmatpush.msra.mxu0 %v347
      %445 = vmatpush.msra.mxu0 %v345
      %446 = vmatpush.msra.mxu0 %v343
      %447 = vmatpush.msra.mxu0 %v341
      %448 = vmatpush.msra.mxu0 %v339
      %449 = vmatpush.msra.mxu0 %v337
      %450 = vmatmul.f32.gmra.mxu0 %v299
      %v451 = vpop.f32.mrf.mxu0
      %v452 = vadd.f32 %v432, %v451
      %453 = vdwg.mxu0
      %v454 = vtanh.pop %v412
      %v455 = vtanh.pop %v452
      %v456 = vld [vmem:[%s4] sm:$0xff]
      %v457 = vld [vmem:[%s4 + $0x8] sm:$0xff]
      %v458 = vld [vmem:[%s4 + $0x10] sm:$0xff]
      %v459 = vld [vmem:[%s4 + $0x18] sm:$0xff]
      %v460 = vld [vmem:[%s4 + $0x20] sm:$0xff]
      %v461 = vld [vmem:[%s4 + $0x28] sm:$0xff]
      %v462 = vld [vmem:[%s4 + $0x30] sm:$0xff]
      %v463 = vld [vmem:[%s4 + $0x38] sm:$0xff]
      %v464 = vld [vmem:[%s4 + $0x40] sm:$0xff]
      %v465 = vld [vmem:[%s4 + $0x48] sm:$0xff]
      %v466 = vld [vmem:[%s4 + $0x50] sm:$0xff]
      %v467 = vld [vmem:[%s4 + $0x58] sm:$0xff]
      %v468 = vld [vmem:[%s4 + $0x60] sm:$0xff]
      %v469 = vld [vmem:[%s4 + $0x68] sm:$0xff]
      %v470 = vld [vmem:[%s4 + $0x70] sm:$0xff]
      %v471 = vld [vmem:[%s4 + $0x78] sm:$0xff]
      %v472 = vld [vmem:[%s4 + $0x80] sm:$0xff]
      %v473 = vld [vmem:[%s4 + $0x88] sm:$0xff]
      %v474 = vld [vmem:[%s4 + $0x90] sm:$0xff]
      %v475 = vld [vmem:[%s4 + $0x98] sm:$0xff]
      %v476 = vld [vmem:[%s4 + $0xa0] sm:$0xff]
      %v477 = vld [vmem:[%s4 + $0xa8] sm:$0xff]
      %v478 = vld [vmem:[%s4 + $0xb0] sm:$0xff]
      %v479 = vld [vmem:[%s4 + $0xb8] sm:$0xff]
      %v480 = vld [vmem:[%s4 + $0xc0] sm:$0xff]
      %v481 = vld [vmem:[%s4 + $0xc8] sm:$0xff]
      %v482 = vld [vmem:[%s4 + $0xd0] sm:$0xff]
      %v483 = vld [vmem:[%s4 + $0xd8] sm:$0xff]
      %v484 = vld [vmem:[%s4 + $0xe0] sm:$0xff]
      %v485 = vld [vmem:[%s4 + $0xe8] sm:$0xff]
      %v486 = vld [vmem:[%s4 + $0xf0] sm:$0xff]
      %v487 = vld [vmem:[%s4 + $0xf8] sm:$0xff]
      %v488 = vld [vmem:[%s5] sm:$0xff]
      %v489 = vld [vmem:[%s5 + $0x8] sm:$0xff]
      %v490 = vld [vmem:[%s5 + $0x10] sm:$0xff]
      %v491 = vld [vmem:[%s5 + $0x18] sm:$0xff]
      %v492 = vld [vmem:[%s5 + $0x20] sm:$0xff]
      %v493 = vld [vmem:[%s5 + $0x28] sm:$0xff]
      %v494 = vld [vmem:[%s5 + $0x30] sm:$0xff]
      %v495 = vld [vmem:[%s5 + $0x38] sm:$0xff]
      %v496 = vld [vmem:[%s5 + $0x40] sm:$0xff]
      %v497 = vld [vmem:[%s5 + $0x48] sm:$0xff]
      %v498 = vld [vmem:[%s5 + $0x50] sm:$0xff]
      %v499 = vld [vmem:[%s5 + $0x58] sm:$0xff]
      %v500 = vld [vmem:[%s5 + $0x60] sm:$0xff]
      %v501 = vld [vmem:[%s5 + $0x68] sm:$0xff]
      %v502 = vld [vmem:[%s5 + $0x70] sm:$0xff]
      %v503 = vld [vmem:[%s5 + $0x78] sm:$0xff]
      %v504 = vld [vmem:[%s5 + $0x80] sm:$0xff]
      %v505 = vld [vmem:[%s5 + $0x88] sm:$0xff]
      %v506 = vld [vmem:[%s5 + $0x90] sm:$0xff]
      %v507 = vld [vmem:[%s5 + $0x98] sm:$0xff]
      %v508 = vld [vmem:[%s5 + $0xa0] sm:$0xff]
      %v509 = vld [vmem:[%s5 + $0xa8] sm:$0xff]
      %v510 = vld [vmem:[%s5 + $0xb0] sm:$0xff]
      %v511 = vld [vmem:[%s5 + $0xb8] sm:$0xff]
      %v512 = vld [vmem:[%s5 + $0xc0] sm:$0xff]
      %v513 = vld [vmem:[%s5 + $0xc8] sm:$0xff]
      %v514 = vld [vmem:[%s5 + $0xd0] sm:$0xff]
      %v515 = vld [vmem:[%s5 + $0xd8] sm:$0xff]
      %v516 = vld [vmem:[%s5 + $0xe0] sm:$0xff]
      %v517 = vld [vmem:[%s5 + $0xe8] sm:$0xff]
      %v518 = vld [vmem:[%s5 + $0xf0] sm:$0xff]
      %v519 = vld [vmem:[%s5 + $0xf8] sm:$0xff]
      %v520 = vld [vmem:[%s5 + $0x100] sm:$0xff]
      %v521 = vld [vmem:[%s5 + $0x108] sm:$0xff]
      %v522 = vld [vmem:[%s5 + $0x110] sm:$0xff]
      %v523 = vld [vmem:[%s5 + $0x118] sm:$0xff]
      %v524 = vld [vmem:[%s5 + $0x120] sm:$0xff]
      %v525 = vld [vmem:[%s5 + $0x128] sm:$0xff]
      %v526 = vld [vmem:[%s5 + $0x130] sm:$0xff]
      %v527 = vld [vmem:[%s5 + $0x138] sm:$0xff]
      %v528 = vld [vmem:[%s5 + $0x140] sm:$0xff]
      %v529 = vld [vmem:[%s5 + $0x148] sm:$0xff]
      %v530 = vld [vmem:[%s5 + $0x150] sm:$0xff]
      %v531 = vld [vmem:[%s5 + $0x158] sm:$0xff]
      %v532 = vld [vmem:[%s5 + $0x160] sm:$0xff]
      %v533 = vld [vmem:[%s5 + $0x168] sm:$0xff]
      %v534 = vld [vmem:[%s5 + $0x170] sm:$0xff]
      %v535 = vld [vmem:[%s5 + $0x178] sm:$0xff]
      %v536 = vld [vmem:[%s5 + $0x180] sm:$0xff]
      %v537 = vld [vmem:[%s5 + $0x188] sm:$0xff]
      %v538 = vld [vmem:[%s5 + $0x190] sm:$0xff]
      %v539 = vld [vmem:[%s5 + $0x198] sm:$0xff]
      %v540 = vld [vmem:[%s5 + $0x1a0] sm:$0xff]
      %v541 = vld [vmem:[%s5 + $0x1a8] sm:$0xff]
      %v542 = vld [vmem:[%s5 + $0x1b0] sm:$0xff]
      %v543 = vld [vmem:[%s5 + $0x1b8] sm:$0xff]
      %v544 = vld [vmem:[%s5 + $0x1c0] sm:$0xff]
      %v545 = vld [vmem:[%s5 + $0x1c8] sm:$0xff]
      %v546 = vld [vmem:[%s5 + $0x1d0] sm:$0xff]
      %v547 = vld [vmem:[%s5 + $0x1d8] sm:$0xff]
      %v548 = vld [vmem:[%s5 + $0x1e0] sm:$0xff]
      %v549 = vld [vmem:[%s5 + $0x1e8] sm:$0xff]
      %v550 = vld [vmem:[%s5 + $0x1f0] sm:$0xff]
      %v551 = vld [vmem:[%s5 + $0x1f8] sm:$0xff]
      %552 = vmatpush.msra.mxu0 %v503
      %553 = vmatpush.msra.mxu0 %v502
      %554 = vmatpush.msra.mxu0 %v501
      %555 = vmatpush.msra.mxu0 %v500
      %556 = vmatpush.msra.mxu0 %v499
      %557 = vmatpush.msra.mxu0 %v498
      %558 = vmatpush.msra.mxu0 %v497
      %559 = vmatpush.msra.mxu0 %v496
      %560 = vmatpush.msra.mxu0 %v495
      %561 = vmatpush.msra.mxu0 %v494
      %562 = vmatpush.msra.mxu0 %v493
      %563 = vmatpush.msra.mxu0 %v492
      %564 = vmatpush.msra.mxu0 %v491
      %565 = vmatpush.msra.mxu0 %v490
      %566 = vmatpush.msra.mxu0 %v489
      %567 = vmatpush.msra.mxu0 %v488
      %568 = vmatmul.f32.gmra.mxu0 %v300
      %v569 = vpop.f32.mrf.mxu0
      %v570 = vadd.f32 0.0, %v569
      %571 = vdwg.mxu0
      %572 = vmatpush.msra.mxu0 %v519
      %573 = vmatpush.msra.mxu0 %v518
      %574 = vmatpush.msra.mxu0 %v517
      %575 = vmatpush.msra.mxu0 %v516
      %576 = vmatpush.msra.mxu0 %v515
      %577 = vmatpush.msra.mxu0 %v514
      %578 = vmatpush.msra.mxu0 %v513
      %579 = vmatpush.msra.mxu0 %v512
      %580 = vmatpush.msra.mxu0 %v511
      %581 = vmatpush.msra.mxu0 %v510
      %582 = vmatpush.msra.mxu0 %v509
      %583 = vmatpush.msra.mxu0 %v508
      %584 = vmatpush.msra.mxu0 %v507
      %585 = vmatpush.msra.mxu0 %v506
      %586 = vmatpush.msra.mxu0 %v505
      %587 = vmatpush.msra.mxu0 %v504
      %588 = vmatmul.f32.gmra.mxu0 %v301
      %v589 = vpop.f32.mrf.mxu0
      %v590 = vadd.f32 %v570, %v589
      %591 = vdwg.mxu0
      %592 = vmatpush.msra.mxu0 %v535
      %593 = vmatpush.msra.mxu0 %v534
      %594 = vmatpush.msra.mxu0 %v533
      %595 = vmatpush.msra.mxu0 %v532
      %596 = vmatpush.msra.mxu0 %v531
      %597 = vmatpush.msra.mxu0 %v530
      %598 = vmatpush.msra.mxu0 %v529
      %599 = vmatpush.msra.mxu0 %v528
      %600 = vmatpush.msra.mxu0 %v527
      %601 = vmatpush.msra.mxu0 %v526
      %602 = vmatpush.msra.mxu0 %v525
      %603 = vmatpush.msra.mxu0 %v524
      %604 = vmatpush.msra.mxu0 %v523
      %605 = vmatpush.msra.mxu0 %v522
      %606 = vmatpush.msra.mxu0 %v521
      %607 = vmatpush.msra.mxu0 %v520
      %608 = vmatmul.f32.gmra.mxu0 %v302
      %v609 = vpop.f32.mrf.mxu0
      %v610 = vadd.f32 %v590, %v609
      %611 = vdwg.mxu0
      %612 = vmatpush.msra.mxu0 %v551
      %613 = vmatpush.msra.mxu0 %v550
      %614 = vmatpush.msra.mxu0 %v549
      %615 = vmatpush.msra.mxu0 %v548
      %616 = vmatpush.msra.mxu0 %v547
      %617 = vmatpush.msra.mxu0 %v546
      %618 = vmatpush.msra.mxu0 %v545
      %619 = vmatpush.msra.mxu0 %v544
      %620 = vmatpush.msra.mxu0 %v543
      %621 = vmatpush.msra.mxu0 %v542
      %622 = vmatpush.msra.mxu0 %v541
      %623 = vmatpush.msra.mxu0 %v540
      %624 = vmatpush.msra.mxu0 %v539
      %625 = vmatpush.msra.mxu0 %v538
      %626 = vmatpush.msra.mxu0 %v537
      %627 = vmatpush.msra.mxu0 %v536
      %628 = vmatmul.f32.gmra.mxu0 %v303
      %v629 = vpop.f32.mrf.mxu0
      %v630 = vadd.f32 %v610, %v629
      %631 = vdwg.mxu0
      %632 = vmatpush.msra.mxu0 %v471
      %633 = vmatpush.msra.mxu0 %v470
      %634 = vmatpush.msra.mxu0 %v469
      %635 = vmatpush.msra.mxu0 %v468
      %636 = vmatpush.msra.mxu0 %v467
      %637 = vmatpush.msra.mxu0 %v466
      %638 = vmatpush.msra.mxu0 %v465
      %639 = vmatpush.msra.mxu0 %v464
      %640 = vmatpush.msra.mxu0 %v463
      %641 = vmatpush.msra.mxu0 %v462
      %642 = vmatpush.msra.mxu0 %v461
      %643 = vmatpush.msra.mxu0 %v460
      %644 = vmatpush.msra.mxu0 %v459
      %645 = vmatpush.msra.mxu0 %v458
      %646 = vmatpush.msra.mxu0 %v457
      %647 = vmatpush.msra.mxu0 %v456
      %648 = vmatmul.f32.gmra.mxu0 %v454
      %v649 = vpop.f32.mrf.mxu0
      %v650 = vadd.f32 %v630, %v649
      %651 = vdwg.mxu0
      %652 = vmatpush.msra.mxu0 %v487
      %653 = vmatpush.msra.mxu0 %v486
      %654 = vmatpush.msra.mxu0 %v485
      %655 = vmatpush.msra.mxu0 %v484
      %656 = vmatpush.msra.mxu0 %v483
      %657 = vmatpush.msra.mxu0 %v482
      %658 = vmatpush.msra.mxu0 %v481
      %659 = vmatpush.msra.mxu0 %v480
      %660 = vmatpush.msra.mxu0 %v479
      %661 = vmatpush.msra.mxu0 %v478
      %662 = vmatpush.msra.mxu0 %v477
      %663 = vmatpush.msra.mxu0 %v476
      %664 = vmatpush.msra.mxu0 %v475
      %665 = vmatpush.msra.mxu0 %v474
      %666 = vmatpush.msra.mxu0 %v473
      %667 = vmatpush.msra.mxu0 %v472
      %668 = vmatmul.f32.gmra.mxu0 %v455
      %v669 = vpop.f32.mrf.mxu0
      %v670 = vadd.f32 %v650, %v669
      %671 = vdwg.mxu0
      %s672 = sld [smem:[#allocation2]]
      %v673 = vstv %s672
      %v674 = vadd.f32 %v670, %v673
      %v675 = vxor.u32 %v674, 2147483648
      %v676 = vmul.f32 %v675, 1.442695
      %v677 = vpow.pop %v676
      %v678 = vadd.f32 %v677, 1.0
      %v679 = vrcp.pop %v678
      %v680 = vmul.f32 %v678, %v679
      %v681 = vsub.f32 1.0, %v680
      %v682 = vmul.f32 %v679, %v681
      %v683 = vadd.f32 %v679, %v682
      %vm684 = vweird.f32 %v678
      %vm685 = vweird.f32 %v679
      %vm686 = vmor %vm684, %vm685
      %v687 = vsel %vm686, %v679, %v683
      %v688 = vand.u32 2147483647, %v678
      %vm689 = vcmp.eq.f32.partialorder %v688, 8.507059e+37
      %v690 = vand.u32 %v678, 2147483648
      %v691 = vor.u32 1.1754944e-38, %v690
      %v692 = vsel %vm689, %v691, %v687
      %v693 = vmul.f32 1.0, %v692
      %vm694 = vcmask 64512
      %695 = vst.msk [vmem:[%s297] sm:$0xff] %vm694, %v693
      %p696 = scmp.lt.s32.totalorder %s19, 3
      %s697 = scalar_select %p696, %s19, 3
      %s698 = smul.addr %s697, 8
      %s699 = scalar_lea.vmem %s7, %s698
      // Predicated region
      $region49: #{tpu_custom_call.1} parent=47 // pred_check
        %p700 = pneg %p194
      $region50: #{tpu_custom_call.1} parent=47 // pred_check_branch
        %702 = sbr.rel (%p700) target = $region52
      $region51: #{tpu_custom_call.1} parent=47 // pred_region
        _
      $region52: #{tpu_custom_call.1} parent=47 // pred_fallthru
        _
    $region48: #{tpu_custom_call.1} parent=5 // pred_fallthru
      _
    %p703 = scmp.le.s32.totalorder 2, %s14
    // Predicated region
    $region53: #{tpu_custom_call.1} parent=5 // pred_check
      %p704 = pneg %p703
    $region54: #{tpu_custom_call.1} parent=5 // pred_check_branch
      %706 = sbr.rel (%p704) target = $region56
    $region55: #{tpu_custom_call.1} parent=5 // pred_region
      %s707 = ssub.s32 %s14, 2
      // Predicated region
      $region57: #{tpu_custom_call.1} parent=55 // pred_check
        %p708 = pneg %p200
      $region58: #{tpu_custom_call.1} parent=55 // pred_check_branch
        %710 = sbr.rel (%p708) target = $region60
      $region59: #{tpu_custom_call.1} parent=55 // pred_region
        %p711 = scmp.lt.s32.totalorder %s20, 3
        %s712 = scalar_select %p711, %s20, 3
        %s713 = smul.addr %s712, 8
        %s714 = scalar_lea.vmem %s7, %s713
      $region60: #{tpu_custom_call.1} parent=55 // pred_fallthru
        _
    $region56: #{tpu_custom_call.1} parent=5 // pred_fallthru
      _
  $region6: #{tpu_custom_call.1} parent=0 // loop_footer
    %s18 = sadd.s32 1, %s14
  $region7: #{tpu_custom_call.1} parent=0 // loop_footer_branch
    %13 = sbr.rel target = $region3
  $region8: #{tpu_custom_call.1} parent=0 // loop_exit
    _

</llo_original>
